<compile_context>
chip_gen: v7x
topology: tpu7x:2x2x1
jax: 0.10.0
libtpu: 0.0.40
codegen_flags: <defaults>
</compile_context>

<pallas_src>
from functools import partial

import jax
import jax.numpy as jnp
from jax import lax
from jax.experimental import pallas as pl
from jax.experimental.pallas import tpu as pltpu


# ---------------------------------------------------------------------------
# Neighbour sum: periodic cross-shaped stencil via shifts (VPU/XLU, no MXU).
# ---------------------------------------------------------------------------
def _proll(x, shift, axis):
    """Periodic (circular) shift by a static amount along `axis`.

    Uses the XLU rotate (pltpu.roll) when the minor two dims are vreg-aligned;
    otherwise a slice+concat shift, which lowers for any lattice size.  The
    direction convention is irrelevant here because callers sum +d and -d.
    """
    axis = axis % x.ndim
    n = x.shape[axis]
    shift = shift % n
    if shift == 0:
        return x
    if axis >= x.ndim - 2 and x.shape[-1] % 128 == 0 and x.shape[-2] % 8 == 0:
        return pltpu.roll(x, shift, axis)
    lo = lax.slice_in_dim(x, n - shift, n, axis=axis)
    hi = lax.slice_in_dim(x, 0, n - shift, axis=axis)
    return lax.concatenate([lo, hi], dimension=axis)


def _neighbour_sum(s, radius):
    """sum_{d=1..R} [shift(s,+d,H) + shift(s,-d,H) + shift(s,+d,W) + shift(s,-d,W)]
    with periodic wraparound.  s: (TB, H, W); axes are per-image, so batching
    multiple images per block cannot leak across images."""
    nbr = None
    for axis in (s.ndim - 2, s.ndim - 1):
        for d in range(1, radius + 1):
            term = _proll(s, d, axis) + _proll(s, -d, axis)
            nbr = term if nbr is None else nbr + term
    return nbr


# ---------------------------------------------------------------------------
# Kernel: one grid step == TB batch elements, full lattice.
# ---------------------------------------------------------------------------
def _ising_kernel(x_ref, rand_ref, drand_ref, state_ref, obvs_ref, *, radius):
    s = x_ref[:, 0, :, :]          # (TB, H, W) spins in {-1, +1}
    b = x_ref[:, 1, :, :]          # (TB, H, W) inverse temperature (last channel)
    rand = rand_ref[...]           # (TB, H, W) uniform [0, 1)  (== torch.rand_like(s))
    drand = drand_ref[...]         # (H, W)     uniform [0, 1)  (shared across batch)

    TB, H, W = s.shape

    nbr = _neighbour_sum(s, radius)
    sn = s * nbr                   # == 0.5 * delta_e == -energy
    delta_e = 2.0 * sn

    # Observables per batch element: e, e^2, |m|, m^2 -> one (TB, 4) store.
    e = (-0.25) * jnp.sum(jnp.sum(sn, axis=2), axis=1, keepdims=True)          # (TB, 1)
    mmean = jnp.sum(jnp.sum(s, axis=2), axis=1, keepdims=True) * (1.0 / float(H * W))
    lane = lax.broadcasted_iota(jnp.int32, (TB, 4), 1)
    obvs_ref[...] = jnp.where(lane == 0, e,
                    jnp.where(lane == 1, e * e,
                    jnp.where(lane == 2, jnp.abs(mmean), mmean * mmean)))

    # Metropolis flip with the 10% "dropout" acceptance mask shared across batch.
    # NOTE: keep the where() AFTER the exp (exp may overflow to +inf where
    # delta_e <= 0; the select discards it, no NaNs are produced).
    p = jnp.exp(-delta_e * b)
    p = jnp.where(delta_e <= 0.0, 1.0, p)
    do_flip = jnp.logical_and(rand < p, drand[None, :, :] > 0.9)
    state_ref[:, 0, :, :] = jnp.where(do_flip, -s, s)
    # The `b` channel is intentionally NOT written: channel 1 of the output is
    # preserved because the output buffer aliases the input (input_output_aliases).


# ---------------------------------------------------------------------------
# Wrapper.
# ---------------------------------------------------------------------------
def _block_bytes(tb, c, h, w, num_obvs):
    # x block + rand block + drand + state-out block (channel 0 only) + obvs block, f32.
    return ((tb * c + tb + 1 + tb) * h * w + tb * num_obvs) * 4


def _choose_tb(batch, c, h, w, num_obvs, budget_bytes=12 << 20):
    """Largest divisor of `batch` whose per-step block footprint fits the budget."""
    for tb in range(batch, 0, -1):
        if batch % tb == 0 and _block_bytes(tb, c, h, w, num_obvs) <= budget_bytes:
            return tb
    return 1


def _ising_forward(x, rand, drand, *, radius):
    """x: (B, C+1, H, W) f32; rand: (B, H, W); drand: (H, W).
    Returns (state (B, C+1, H, W), obvs (4, B))."""
    B, C, H, W = x.shape
    num_obvs = 4
    TB = _choose_tb(B, C, H, W, num_obvs)
    grid = (B // TB,)

    blk = _block_bytes(TB, C, H, W, num_obvs)
    # Double-buffered pipeline footprint + headroom; capped at v7x physical VMEM.
    vmem_limit = int(min(64 << 20, max(32 << 20, 2 * blk + (2 << 20))))

    state, obvs = pl.pallas_call(
        partial(_ising_kernel, radius=radius),
        grid=grid,
        in_specs=[
            pl.BlockSpec((TB, C, H, W), lambda i: (i, 0, 0, 0)),   # x (NCHW)
            pl.BlockSpec((TB, H, W), lambda i: (i, 0, 0)),         # rand
            pl.BlockSpec((H, W), lambda i: (0, 0)),                # drand (shared)
        ],
        out_specs=(
            pl.BlockSpec((TB, 1, H, W), lambda i: (i, 0, 0, 0)),   # spins only
            pl.BlockSpec((TB, num_obvs), lambda i: (i, 0)),        # observables
        ),
        out_shape=(
            jax.ShapeDtypeStruct((B, C, H, W), jnp.float32),
            jax.ShapeDtypeStruct((B, num_obvs), jnp.float32),
        ),
        input_output_aliases={0: 0},   # in-place NCHW state update
        compiler_params=pltpu.CompilerParams(
            dimension_semantics=("parallel",),
            vmem_limit_bytes=vmem_limit,
        ),
    )(x, rand, drand)

    return state, obvs.T   # (4, B): rows = e, e^2, |m|, m^2


class IsingCA:
    """Pallas TPU port of the PyTorch isingCA module (CHANNELS must be 1,
    the only configuration the reference broadcast supports)."""

    def __init__(self, res, channels=1, beta=1.0, radius=2):
        assert channels == 1, "PyTorch reference broadcast only works for CHANNELS=1"
        self.res = tuple(res)
        self.channels = channels
        self.beta = float(beta)
        self.radius = int(radius)
        self.num_obvs = 4
        # x is DONATED: forward() consumes the caller's state buffer (in-place
        # device update).  Do not reuse x after calling forward().
        self._forward_jit = jax.jit(
            partial(_ising_forward, radius=self.radius),
            donate_argnums=(0,),
        )

    def init_grid(self, key, bs=1):
        """Deterministic analogue of isingCA.initGrid."""
        H, W = self.res
        k0, k1 = jax.random.split(key)
        thresh = jax.random.uniform(k0, ())
        rand = (jax.random.uniform(k1, (bs, self.channels + 1, H, W)) > thresh) * 2.0 - 1.0
        rand = rand.at[:, -1, ...].set(self.beta)
        obvs = jnp.zeros((1, self.num_obvs, H, W), jnp.float32)
        return rand.astype(jnp.float32), obvs

    def forward(self, x, rand, drand, pd=True):
        """x: (B, C+1, H, W); rand: (B, H, W); drand: (H, W).
        Returns (state (B, C+1, H, W), obvs (4, B)) matching Rule.forward."""
        assert pd, "only periodic boundary conditions are implemented"
        B, C, H, W = x.shape
        assert C == self.channels + 1 and (H, W) == self.res
        return self._forward_jit(x.astype(jnp.float32),
                                 rand.astype(jnp.float32),
                                 drand.astype(jnp.float32))


# ---------------------------------------------------------------------------
# Pure-JAX reference (mirrors Rule.forward with pd=True) + demo check.
# ---------------------------------------------------------------------------
def _reference_forward(x, rand, drand, radius):
    s = x[:, :1].astype(jnp.float32)   # (B, 1, H, W)
    b = x[:, -1:].astype(jnp.float32)
    nbr = jnp.zeros_like(s)
    for d in range(1, radius + 1):
        nbr = nbr + jnp.roll(s, d, 2) + jnp.roll(s, -d, 2)
        nbr = nbr + jnp.roll(s, d, 3) + jnp.roll(s, -d, 3)
    delta_e = 2.0 * s * nbr
    energy = -0.5 * delta_e
    e = (energy / 4.0).sum(axis=(1, 2, 3))
    e2 = e ** 2
    mmean = s.mean(axis=(1, 2, 3))
    m = jnp.abs(mmean)
    m2 = mmean ** 2
    obvs = jnp.stack([e, e2, m, m2], axis=0)
    p = jnp.exp(-delta_e * b)
    p = jnp.where(delta_e <= 0.0, jnp.ones_like(s), p)
    dm = (drand > 0.9)[None, None]
    flip = jnp.where(jnp.logical_and(rand[:, None] < p, dm), -1.0, 1.0)
    state = jnp.concatenate([s * flip, b], axis=1)
    return state, obvs


if __name__ == "__main__":
    B, H, W = 2, 16, 16
    model = IsingCA((H, W), channels=1, beta=1.0, radius=2)

    key = jax.random.PRNGKey(0)
    k_init, k_rand, k_drop = jax.random.split(key, 3)

    x, _ = model.init_grid(k_init, bs=B)                    # (2, 2, 16, 16)
    rand = jax.random.uniform(k_rand, (B, H, W), jnp.float32)
    drand = jax.random.uniform(k_drop, (H, W), jnp.float32)

    # Compute the reference FIRST: forward() donates / clobbers x's buffer.
    ref_state, ref_obvs = _reference_forward(x, rand, drand, model.radius)
    jax.block_until_ready((ref_state, ref_obvs))

    state, obvs = model.forward(x, rand, drand, pd=True)
    jax.block_until_ready((state, obvs))

    assert state.shape == (B, 2, H, W) and obvs.shape == (4, B)
    assert jnp.allclose(state, ref_state, atol=1e-5), "state mismatch vs reference"
    assert jnp.allclose(obvs, ref_obvs, rtol=1e-5, atol=1e-5), "obvs mismatch vs reference"

    print("KERNEL_OK")
</pallas_src>

<mosaic_0001>
module attributes {stable_mosaic.version = 11 : i64} {
  func.func @_ising_kernel(%arg0: i32, %arg1: memref<2x2x16x16xf32, #tpu.memory_space<vmem>>, %arg2: memref<2x16x16xf32, #tpu.memory_space<vmem>>, %arg3: memref<16x16xf32, #tpu.memory_space<vmem>>, %arg4: memref<2x1x16x16xf32, #tpu.memory_space<vmem>>, %arg5: memref<2x4xf32, #tpu.memory_space<vmem>>) attributes {dimension_semantics = [#tpu.dimension_semantics<parallel>], iteration_bounds = array<i64: 1>, scalar_prefetch = 0 : i64, scratch_operands = 0 : i64, tpu.core_type = #tpu.core_type<tc>, window_params = [{transform_indices = @transform_0, window_bounds = array<i64: 2, 2, 16, 16>}, {transform_indices = @transform_1, window_bounds = array<i64: 2, 16, 16>}, {pipeline_mode = #tpu.pipeline_mode<synchronous>, transform_indices = @transform_2, window_bounds = array<i64: 16, 16>}, {transform_indices = @transform_3, window_bounds = array<i64: 2, 1, 16, 16>}, {transform_indices = @transform_4, window_bounds = array<i64: 2, 4>}]} {
    %c0 = arith.constant 0 : index
    %c0_0 = arith.constant 0 : index
    %c0_1 = arith.constant 0 : index
    %c0_2 = arith.constant 0 : index
    %0 = vector.load %arg1[%c0, %c0_0, %c0_1, %c0_2] : memref<2x2x16x16xf32, #tpu.memory_space<vmem>>, vector<2x1x16x16xf32>
    %1 = vector.shape_cast %0 : vector<2x1x16x16xf32> to vector<2x16x16xf32>
    %c0_3 = arith.constant 0 : index
    %c1 = arith.constant 1 : index
    %c0_4 = arith.constant 0 : index
    %c0_5 = arith.constant 0 : index
    %2 = vector.load %arg1[%c0_3, %c1, %c0_4, %c0_5] : memref<2x2x16x16xf32, #tpu.memory_space<vmem>>, vector<2x1x16x16xf32>
    %3 = vector.shape_cast %2 : vector<2x1x16x16xf32> to vector<2x16x16xf32>
    %c0_6 = arith.constant 0 : index
    %c0_7 = arith.constant 0 : index
    %c0_8 = arith.constant 0 : index
    %4 = vector.load %arg2[%c0_6, %c0_7, %c0_8] : memref<2x16x16xf32, #tpu.memory_space<vmem>>, vector<2x16x16xf32>
    %c0_9 = arith.constant 0 : index
    %c0_10 = arith.constant 0 : index
    %5 = vector.load %arg3[%c0_9, %c0_10] : memref<16x16xf32, #tpu.memory_space<vmem>>, vector<16x16xf32>
    %6 = vector.extract_strided_slice %1 {offsets = [0, 15, 0], sizes = [2, 1, 16], strides = [1, 1, 1]} : vector<2x16x16xf32> to vector<2x1x16xf32>
    %7 = vector.extract_strided_slice %1 {offsets = [0, 0, 0], sizes = [2, 15, 16], strides = [1, 1, 1]} : vector<2x16x16xf32> to vector<2x15x16xf32>
    %8 = tpu.concatenate %6, %7 in 1 : vector<2x1x16xf32>, vector<2x15x16xf32> -> vector<2x16x16xf32>
    %9 = vector.extract_strided_slice %1 {offsets = [0, 1, 0], sizes = [2, 15, 16], strides = [1, 1, 1]} : vector<2x16x16xf32> to vector<2x15x16xf32>
    %10 = vector.extract_strided_slice %1 {offsets = [0, 0, 0], sizes = [2, 1, 16], strides = [1, 1, 1]} : vector<2x16x16xf32> to vector<2x1x16xf32>
    %11 = tpu.concatenate %9, %10 in 1 : vector<2x15x16xf32>, vector<2x1x16xf32> -> vector<2x16x16xf32>
    %12 = arith.addf %8, %11 : vector<2x16x16xf32>
    %13 = vector.extract_strided_slice %1 {offsets = [0, 14, 0], sizes = [2, 2, 16], strides = [1, 1, 1]} : vector<2x16x16xf32> to vector<2x2x16xf32>
    %14 = vector.extract_strided_slice %1 {offsets = [0, 0, 0], sizes = [2, 14, 16], strides = [1, 1, 1]} : vector<2x16x16xf32> to vector<2x14x16xf32>
    %15 = tpu.concatenate %13, %14 in 1 : vector<2x2x16xf32>, vector<2x14x16xf32> -> vector<2x16x16xf32>
    %16 = vector.extract_strided_slice %1 {offsets = [0, 2, 0], sizes = [2, 14, 16], strides = [1, 1, 1]} : vector<2x16x16xf32> to vector<2x14x16xf32>
    %17 = vector.extract_strided_slice %1 {offsets = [0, 0, 0], sizes = [2, 2, 16], strides = [1, 1, 1]} : vector<2x16x16xf32> to vector<2x2x16xf32>
    %18 = tpu.concatenate %16, %17 in 1 : vector<2x14x16xf32>, vector<2x2x16xf32> -> vector<2x16x16xf32>
    %19 = arith.addf %15, %18 : vector<2x16x16xf32>
    %20 = arith.addf %12, %19 : vector<2x16x16xf32>
    %21 = vector.extract_strided_slice %1 {offsets = [0, 0, 15], sizes = [2, 16, 1], strides = [1, 1, 1]} : vector<2x16x16xf32> to vector<2x16x1xf32>
    %22 = vector.extract_strided_slice %1 {offsets = [0, 0, 0], sizes = [2, 16, 15], strides = [1, 1, 1]} : vector<2x16x16xf32> to vector<2x16x15xf32>
    %23 = tpu.concatenate %21, %22 in 2 : vector<2x16x1xf32>, vector<2x16x15xf32> -> vector<2x16x16xf32>
    %24 = vector.extract_strided_slice %1 {offsets = [0, 0, 1], sizes = [2, 16, 15], strides = [1, 1, 1]} : vector<2x16x16xf32> to vector<2x16x15xf32>
    %25 = vector.extract_strided_slice %1 {offsets = [0, 0, 0], sizes = [2, 16, 1], strides = [1, 1, 1]} : vector<2x16x16xf32> to vector<2x16x1xf32>
    %26 = tpu.concatenate %24, %25 in 2 : vector<2x16x15xf32>, vector<2x16x1xf32> -> vector<2x16x16xf32>
    %27 = arith.addf %23, %26 : vector<2x16x16xf32>
    %28 = arith.addf %20, %27 : vector<2x16x16xf32>
    %29 = vector.extract_strided_slice %1 {offsets = [0, 0, 14], sizes = [2, 16, 2], strides = [1, 1, 1]} : vector<2x16x16xf32> to vector<2x16x2xf32>
    %30 = vector.extract_strided_slice %1 {offsets = [0, 0, 0], sizes = [2, 16, 14], strides = [1, 1, 1]} : vector<2x16x16xf32> to vector<2x16x14xf32>
    %31 = tpu.concatenate %29, %30 in 2 : vector<2x16x2xf32>, vector<2x16x14xf32> -> vector<2x16x16xf32>
    %32 = vector.extract_strided_slice %1 {offsets = [0, 0, 2], sizes = [2, 16, 14], strides = [1, 1, 1]} : vector<2x16x16xf32> to vector<2x16x14xf32>
    %33 = vector.extract_strided_slice %1 {offsets = [0, 0, 0], sizes = [2, 16, 2], strides = [1, 1, 1]} : vector<2x16x16xf32> to vector<2x16x2xf32>
    %34 = tpu.concatenate %32, %33 in 2 : vector<2x16x14xf32>, vector<2x16x2xf32> -> vector<2x16x16xf32>
    %35 = arith.addf %31, %34 : vector<2x16x16xf32>
    %36 = arith.addf %28, %35 : vector<2x16x16xf32>
    %37 = arith.mulf %1, %36 : vector<2x16x16xf32>
    %cst = arith.constant 2.000000e+00 : f32
    %38 = vector.broadcast %cst : f32 to vector<2x16x16xf32>
    %39 = arith.mulf %38, %37 : vector<2x16x16xf32>
    %cst_11 = arith.constant dense<0.000000e+00> : vector<2x16xf32>
    %40 = vector.multi_reduction <add>, %37, %cst_11 [2] : vector<2x16x16xf32> to vector<2x16xf32>
    %cst_12 = arith.constant dense<0.000000e+00> : vector<2xf32>
    %41 = vector.multi_reduction <add>, %40, %cst_12 [1] : vector<2x16xf32> to vector<2xf32>
    %42 = vector.shape_cast %41 : vector<2xf32> to vector<2x1xf32>
    %cst_13 = arith.constant -2.500000e-01 : f32
    %43 = vector.broadcast %cst_13 : f32 to vector<2x1xf32>
    %44 = arith.mulf %43, %42 : vector<2x1xf32>
    %cst_14 = arith.constant dense<0.000000e+00> : vector<2x16xf32>
    %45 = vector.multi_reduction <add>, %1, %cst_14 [2] : vector<2x16x16xf32> to vector<2x16xf32>
    %cst_15 = arith.constant dense<0.000000e+00> : vector<2xf32>
    %46 = vector.multi_reduction <add>, %45, %cst_15 [1] : vector<2x16xf32> to vector<2xf32>
    %47 = vector.shape_cast %46 : vector<2xf32> to vector<2x1xf32>
    %cst_16 = arith.constant 3.906250e-03 : f32
    %48 = vector.broadcast %cst_16 : f32 to vector<2x1xf32>
    %49 = arith.mulf %47, %48 : vector<2x1xf32>
    %50 = tpu.iota {dimensions = array<i32: 1>} : vector<2x4xi32>
    %c0_i32 = arith.constant 0 : i32
    %51 = vector.broadcast %c0_i32 : i32 to vector<2x4xi32>
    %52 = arith.cmpi eq, %50, %51 : vector<2x4xi32>
    %c1_i32 = arith.constant 1 : i32
    %53 = vector.broadcast %c1_i32 : i32 to vector<2x4xi32>
    %54 = arith.cmpi eq, %50, %53 : vector<2x4xi32>
    %55 = arith.mulf %44, %44 : vector<2x1xf32>
    %c2_i32 = arith.constant 2 : i32
    %56 = vector.broadcast %c2_i32 : i32 to vector<2x4xi32>
    %57 = arith.cmpi eq, %50, %56 : vector<2x4xi32>
    %58 = math.absf %49 : vector<2x1xf32>
    %59 = arith.mulf %49, %49 : vector<2x1xf32>
    %60 = vector.shape_cast %58 : vector<2x1xf32> to vector<2x1xf32>
    %61 = vector.broadcast %60 : vector<2x1xf32> to vector<2x4xf32>
    %62 = vector.shape_cast %59 : vector<2x1xf32> to vector<2x1xf32>
    %63 = vector.broadcast %62 : vector<2x1xf32> to vector<2x4xf32>
    %64 = arith.select %57, %61, %63 : vector<2x4xi1>, vector<2x4xf32>
    %65 = vector.shape_cast %55 : vector<2x1xf32> to vector<2x1xf32>
    %66 = vector.broadcast %65 : vector<2x1xf32> to vector<2x4xf32>
    %67 = arith.select %54, %66, %64 : vector<2x4xi1>, vector<2x4xf32>
    %68 = vector.shape_cast %44 : vector<2x1xf32> to vector<2x1xf32>
    %69 = vector.broadcast %68 : vector<2x1xf32> to vector<2x4xf32>
    %70 = arith.select %52, %69, %67 : vector<2x4xi1>, vector<2x4xf32>
    %c0_17 = arith.constant 0 : index
    %c0_18 = arith.constant 0 : index
    %71 = vector.load %arg5[%c0_17, %c0_18] : memref<2x4xf32, #tpu.memory_space<vmem>>, vector<2x4xf32>
    tpu.vector_store %arg5[%c0_17, %c0_18], %70 {strides = array<i32>} : memref<2x4xf32, #tpu.memory_space<vmem>>, vector<2x4xf32>,
    %cst_19 = arith.constant 0.000000e+00 : f32
    %72 = vector.broadcast %cst_19 : f32 to vector<2x16x16xf32>
    %73 = arith.subf %72, %39 : vector<2x16x16xf32>
    %74 = arith.mulf %73, %3 : vector<2x16x16xf32>
    %75 = math.exp %74 : vector<2x16x16xf32>
    %cst_20 = arith.constant 0.000000e+00 : f32
    %76 = vector.broadcast %cst_20 : f32 to vector<2x16x16xf32>
    %77 = arith.cmpf ole, %39, %76 : vector<2x16x16xf32>
    %cst_21 = arith.constant 1.000000e+00 : f32
    %78 = vector.broadcast %cst_21 : f32 to vector<2x16x16xf32>
    %79 = arith.select %77, %78, %75 : vector<2x16x16xi1>, vector<2x16x16xf32>
    %80 = arith.cmpf olt, %4, %79 : vector<2x16x16xf32>
    %81 = vector.shape_cast %5 : vector<16x16xf32> to vector<1x16x16xf32>
    %cst_22 = arith.constant 0.899999976 : f32
    %82 = vector.broadcast %cst_22 : f32 to vector<1x16x16xf32>
    %83 = arith.cmpf ogt, %81, %82 : vector<1x16x16xf32>
    %84 = vector.broadcast %83 : vector<1x16x16xi1> to vector<2x16x16xi1>
    %85 = arith.andi %80, %84 : vector<2x16x16xi1>
    %cst_23 = arith.constant 0.000000e+00 : f32
    %86 = vector.broadcast %cst_23 : f32 to vector<2x16x16xf32>
    %87 = arith.subf %86, %1 : vector<2x16x16xf32>
    %88 = arith.select %85, %87, %1 : vector<2x16x16xi1>, vector<2x16x16xf32>
    %c0_24 = arith.constant 0 : index
    %c0_25 = arith.constant 0 : index
    %c0_26 = arith.constant 0 : index
    %c0_27 = arith.constant 0 : index
    %89 = vector.load %arg4[%c0_24, %c0_25, %c0_26, %c0_27] : memref<2x1x16x16xf32, #tpu.memory_space<vmem>>, vector<2x1x16x16xf32>
    %90 = vector.shape_cast %89 : vector<2x1x16x16xf32> to vector<2x16x16xf32>
    %91 = vector.shape_cast %88 : vector<2x16x16xf32> to vector<2x1x16x16xf32>
    tpu.vector_store %arg4[%c0_24, %c0_25, %c0_26, %c0_27], %91 {strides = array<i32>} : memref<2x1x16x16xf32, #tpu.memory_space<vmem>>, vector<2x1x16x16xf32>,
    return
  }
  func.func @transform_0(%arg0: i32) -> (i32, i32, i32, i32) {
    %c0_i32 = arith.constant 0 : i32
    %c0_i32_0 = arith.constant 0 : i32
    %c0_i32_1 = arith.constant 0 : i32
    %c0_i32_2 = arith.constant 0 : i32
    return %arg0, %c0_i32, %c0_i32_0, %c0_i32_1 : i32, i32, i32, i32
  }
  func.func @transform_1(%arg0: i32) -> (i32, i32, i32) {
    %c0_i32 = arith.constant 0 : i32
    %c0_i32_0 = arith.constant 0 : i32
    %c0_i32_1 = arith.constant 0 : i32
    return %arg0, %c0_i32, %c0_i32_0 : i32, i32, i32
  }
  func.func @transform_2(%arg0: i32) -> (i32, i32) {
    %c0_i32 = arith.constant 0 : i32
    %c0_i32_0 = arith.constant 0 : i32
    %c0_i32_1 = arith.constant 0 : i32
    return %c0_i32, %c0_i32_0 : i32, i32
  }
  func.func @transform_3(%arg0: i32) -> (i32, i32, i32, i32) {
    %c0_i32 = arith.constant 0 : i32
    %c0_i32_0 = arith.constant 0 : i32
    %c0_i32_1 = arith.constant 0 : i32
    %c0_i32_2 = arith.constant 0 : i32
    return %arg0, %c0_i32, %c0_i32_0, %c0_i32_1 : i32, i32, i32, i32
  }
  func.func @transform_4(%arg0: i32) -> (i32, i32) {
    %c0_i32 = arith.constant 0 : i32
    %c0_i32_0 = arith.constant 0 : i32
    return %arg0, %c0_i32 : i32, i32
  }
}

</mosaic_0001>

<llo_original>
// kernel: _ising_forward.1
$region0: #{_ising_forward.1}
  #allocation0 [shape = 'u32[]', space=smem, size = 0x4, offset = 0x4, fixed_abs, tag = 'smem constant byte address 0x4 - core index']
  #allocation1 [shape = 'u32[144,128]{1,0:T(1,128)}', space=vmem, size = 0x12000, scoped, tag = 'internal scratch']
  #allocation11 [shape = 's32[]', space=sflag, size = 0x4, offset = 0, fixed_abs, tag = 'sflag constant byte address 0x0 - dummy sync flag']
  %s0 = inlined_call_operand.hbm [shape: f32[2,2,16,16], index: 0, kind: input, shape index: {}, may-alias: {0,3}]
  %s1 = inlined_call_operand.hbm [shape: f32[2,16,16], index: 1, kind: input, shape index: {}]
  %s2 = inlined_call_operand.hbm [shape: f32[16,16], index: 2, kind: input, shape index: {}]
  %s3 = inlined_call_operand.hbm [shape: f32[2,2,16,16], index: 3, kind: output, shape index: {0}, may-alias: {0,3}]
  %s4 = inlined_call_operand.hbm [shape: f32[2,4], index: 4, kind: output, shape index: {1}]
  %5 = xla_tuple %s3, %s4
  %s6 = sld [smem:[#allocation0]]
  $region42: #{_ising_forward.1} parent=0
    _
  %s8 = ssub.s32 1, %s6
  %s9 = scalar_select 0, %s8, %s6
  $region1: #{_ising_forward.1} parent=0
    #allocation2 [shape = 'u8[32768]{0}', space=vmem, size = 0x8000, scoped, tag = 'input window, operand 0, single buffered']
    #allocation3 [shape = 's32[1]{0}', space=sflag, size = 0x4, scoped, tag = 'scoped memory for _ising_forward.1']
    #allocation4 [shape = 's32[1]{0}', space=sflag, size = 0x4, scoped, tag = 'scoped memory for _ising_forward.1']
    #allocation5 [shape = 'u8[16384]{0}', space=vmem, size = 0x4000, scoped, tag = 'input window, operand 1, single buffered']
    #allocation6 [shape = 's32[1]{0}', space=sflag, size = 0x4, scoped, tag = 'scoped memory for _ising_forward.1']
    #allocation7 [shape = 'u8[8192]{0}', space=vmem, size = 0x2000, scoped, tag = 'input window, operand 2, single buffered']
    #allocation8 [shape = 'u8[16384]{0}', space=vmem, size = 0x4000, scoped, tag = 'output window, operand 0, single buffered']
    #allocation9 [shape = 'u8[1024]{0}', space=vmem, size = 0x400, scoped, tag = 'output window, operand 1, single buffered']
    #allocation10 [shape = 's32[1]{0}', space=sflag, size = 0x4, scoped, tag = 'scoped memory for _ising_forward.1']
    %10 = vsyncpa [#allocation3], 0
    %11 = vsyncpa [#allocation6], 0
    %12 = vsyncpa [#allocation4], 0
    %13 = vsyncpa [#allocation10], 0
    // Predicated region
    $region2: #{_ising_forward.1} parent=1 // pred_check
      _
    $region3: #{_ising_forward.1} parent=1 // pred_check_branch
      %15 = sbr.rel (0) target = $region5
    $region4: #{_ising_forward.1} parent=1 // pred_region
      %s17 = ssub.s32 1024, 1024
      %18 = vsyncadd [#allocation3], %s17
      %s19 = sshll.u32 [#allocation2], 4
      %s20 = int_to_ptr.vmem [resolvable:$true] %s19
      %25 = dma.hbm_to_vmem [thread:$0]  %s0, 1024, %s20, [#allocation3], 128, 128, 8
    $region5: #{_ising_forward.1} parent=1 // pred_fallthru
      _
    // Predicated region
    $region6: #{_ising_forward.1} parent=1 // pred_check
      _
    $region7: #{_ising_forward.1} parent=1 // pred_check_branch
      %27 = sbr.rel (0) target = $region9
    $region8: #{_ising_forward.1} parent=1 // pred_region
      %s29 = ssub.s32 512, 512
      %30 = vsyncadd [#allocation6], %s29
      %s31 = sshll.u32 [#allocation5], 4
      %s32 = int_to_ptr.vmem [resolvable:$true] %s31
      %37 = dma.hbm_to_vmem [thread:$0]  %s1, 512, %s32, [#allocation6], 128, 128, 8
    $region9: #{_ising_forward.1} parent=1 // pred_fallthru
      _
    // Predicated region
    $region10: #{_ising_forward.1} parent=1 // pred_check
      _
    $region11: #{_ising_forward.1} parent=1 // pred_check_branch
      %39 = sbr.rel (0) target = $region13
    $region12: #{_ising_forward.1} parent=1 // pred_region
      %s41 = ssub.s32 256, 256
      %42 = vsyncadd [#allocation6], %s41
      %s43 = sshll.u32 [#allocation7], 4
      %s44 = int_to_ptr.vmem [resolvable:$true] %s43
      %49 = dma.hbm_to_vmem [thread:$0]  %s2, 256, %s44, [#allocation6], 128, 128, 8
    $region13: #{_ising_forward.1} parent=1 // pred_fallthru
      _
    // Predicated region
    $region14: #{_ising_forward.1} parent=1 // pred_check
      _
    $region15: #{_ising_forward.1} parent=1 // pred_check_branch
      %51 = sbr.rel (0) target = $region17
    $region16: #{_ising_forward.1} parent=1 // pred_region
      %52 = dma.done [#allocation3], 1024
    $region17: #{_ising_forward.1} parent=1 // pred_fallthru
      _
    // Predicated region
    $region18: #{_ising_forward.1} parent=1 // pred_check
      _
    $region19: #{_ising_forward.1} parent=1 // pred_check_branch
      %54 = sbr.rel (0) target = $region21
    $region20: #{_ising_forward.1} parent=1 // pred_region
      %55 = dma.done [#allocation6], 512
    $region21: #{_ising_forward.1} parent=1 // pred_fallthru
      _
    // Predicated region
    $region22: #{_ising_forward.1} parent=1 // pred_check
      _
    $region23: #{_ising_forward.1} parent=1 // pred_check_branch
      %57 = sbr.rel (0) target = $region25
    $region24: #{_ising_forward.1} parent=1 // pred_region
      %58 = dma.done [#allocation6], 256
    $region25: #{_ising_forward.1} parent=1 // pred_fallthru
      _
    %v59 = vld [vmem:[#allocation2] sm:$0xff]
    %v60 = vld [vmem:[#allocation2 + $0x8] sm:$0xff]
    %v61 = vld [vmem:[#allocation2 + $0x20] sm:$0xff]
    %v62 = vld [vmem:[#allocation2 + $0x28] sm:$0xff]
    %s63 = scalar_lea.vmem [#allocation2], 16
    %v64 = vld [vmem:[%s63] sm:$0xff]
    %v65 = vld [vmem:[%s63 + $0x8] sm:$0xff]
    %v66 = vld [vmem:[%s63 + $0x20] sm:$0xff]
    %v67 = vld [vmem:[%s63 + $0x28] sm:$0xff]
    %v68 = vld [vmem:[#allocation5] sm:$0xff]
    %v69 = vld [vmem:[#allocation5 + $0x8] sm:$0xff]
    %v70 = vld [vmem:[#allocation5 + $0x10] sm:$0xff]
    %v71 = vld [vmem:[#allocation5 + $0x18] sm:$0xff]
    %v72 = vld [vmem:[#allocation7] sm:$0xff]
    %v73 = vld [vmem:[#allocation7 + $0x8] sm:$0xff]
    %v76 = vrot.slane %v60, 7
    %v77 = vrot.slane %v62, 7
    %vm82 = vcmask 1040384
    %v83 = vrot.slane %v59, 7
    %v84 = vsel %vm82, %v83, %v76
    %v85 = vrot.slane %v61, 7
    %v86 = vsel %vm82, %v85, %v77
    %v91 = vsel %vm82, %v76, %v83
    %v92 = vsel %vm82, %v77, %v85
    %vm93 = vcmask 1046528
    %v94 = vrot.slane %v59, 1
    %v95 = vrot.slane %v60, 1
    %v96 = vsel %vm93, %v94, %v95
    %v97 = vrot.slane %v61, 1
    %v98 = vrot.slane %v62, 1
    %v99 = vsel %vm93, %v97, %v98
    %v106 = vsel %vm93, %v95, %v94
    %v107 = vsel %vm93, %v98, %v97
    %v108 = vadd.f32 %v91, %v96
    %v109 = vadd.f32 %v84, %v106
    %v110 = vadd.f32 %v92, %v99
    %v111 = vadd.f32 %v86, %v107
    %v112 = vrot.slane %v60, 6
    %v113 = vrot.slane %v62, 6
    %vm116 = vcmask 1041408
    %v117 = vrot.slane %v59, 6
    %v118 = vsel %vm116, %v117, %v112
    %v119 = vrot.slane %v61, 6
    %v120 = vsel %vm116, %v119, %v113
    %v125 = vsel %vm116, %v112, %v117
    %v126 = vsel %vm116, %v113, %v119
    %vm127 = vcmask 1045504
    %v128 = vrot.slane %v59, 2
    %v129 = vrot.slane %v60, 2
    %v130 = vsel %vm127, %v128, %v129
    %v131 = vrot.slane %v61, 2
    %v132 = vrot.slane %v62, 2
    %v133 = vsel %vm127, %v131, %v132
    %v140 = vsel %vm127, %v129, %v128
    %v141 = vsel %vm127, %v132, %v131
    %v142 = vadd.f32 %v125, %v130
    %v143 = vadd.f32 %v118, %v140
    %v144 = vadd.f32 %v126, %v133
    %v145 = vadd.f32 %v120, %v141
    %v146 = vadd.f32 %v108, %v142
    %v147 = vadd.f32 %v109, %v143
    %v148 = vadd.f32 %v110, %v144
    %v149 = vadd.f32 %v111, %v145
    %150 = vrot.lane.b32.xlu0 %v59, 113
    %v151 = vpop.permute.xlu0 %150
    %152 = vrot.lane.b32.xlu0 %v60, 113
    %v153 = vpop.permute.xlu0 %152
    %154 = vrot.lane.b32.xlu0 %v61, 113
    %v155 = vpop.permute.xlu0 %154
    %156 = vrot.lane.b32.xlu0 %v62, 113
    %v157 = vpop.permute.xlu0 %156
    %162 = vrot.lane.b32.xlu0 %v59, 1
    %v163 = vpop.permute.xlu0 %162
    %164 = vrot.lane.b32.xlu0 %v60, 1
    %v165 = vpop.permute.xlu0 %164
    %166 = vrot.lane.b32.xlu0 %v61, 1
    %v167 = vpop.permute.xlu0 %166
    %168 = vrot.lane.b32.xlu0 %v62, 1
    %v169 = vpop.permute.xlu0 %168
    %vm174 = vcmask 7168
    %v175 = vsel %vm174, %v151, %v163
    %v176 = vsel %vm174, %v153, %v165
    %v177 = vsel %vm174, %v155, %v167
    %v178 = vsel %vm174, %v157, %v169
    %179 = vrot.lane.b32.xlu0 %v59, 127
    %v180 = vpop.permute.xlu0 %179
    %181 = vrot.lane.b32.xlu0 %v60, 127
    %v182 = vpop.permute.xlu0 %181
    %183 = vrot.lane.b32.xlu0 %v61, 127
    %v184 = vpop.permute.xlu0 %183
    %185 = vrot.lane.b32.xlu0 %v62, 127
    %v186 = vpop.permute.xlu0 %185
    %191 = vrot.lane.b32.xlu0 %v59, 15
    %v192 = vpop.permute.xlu0 %191
    %193 = vrot.lane.b32.xlu0 %v60, 15
    %v194 = vpop.permute.xlu0 %193
    %195 = vrot.lane.b32.xlu0 %v61, 15
    %v196 = vpop.permute.xlu0 %195
    %197 = vrot.lane.b32.xlu0 %v62, 15
    %v198 = vpop.permute.xlu0 %197
    %vm203 = vcmask 121856
    %v204 = vsel %vm203, %v180, %v192
    %v205 = vsel %vm203, %v182, %v194
    %v206 = vsel %vm203, %v184, %v196
    %v207 = vsel %vm203, %v186, %v198
    %v208 = vadd.f32 %v175, %v204
    %v209 = vadd.f32 %v176, %v205
    %v210 = vadd.f32 %v177, %v206
    %v211 = vadd.f32 %v178, %v207
    %v212 = vadd.f32 %v146, %v208
    %v213 = vadd.f32 %v147, %v209
    %v214 = vadd.f32 %v148, %v210
    %v215 = vadd.f32 %v149, %v211
    %216 = vrot.lane.b32.xlu0 %v59, 114
    %v217 = vpop.permute.xlu0 %216
    %218 = vrot.lane.b32.xlu0 %v60, 114
    %v219 = vpop.permute.xlu0 %218
    %220 = vrot.lane.b32.xlu0 %v61, 114
    %v221 = vpop.permute.xlu0 %220
    %222 = vrot.lane.b32.xlu0 %v62, 114
    %v223 = vpop.permute.xlu0 %222
    %228 = vrot.lane.b32.xlu0 %v59, 2
    %v229 = vpop.permute.xlu0 %228
    %230 = vrot.lane.b32.xlu0 %v60, 2
    %v231 = vpop.permute.xlu0 %230
    %232 = vrot.lane.b32.xlu0 %v61, 2
    %v233 = vpop.permute.xlu0 %232
    %234 = vrot.lane.b32.xlu0 %v62, 2
    %v235 = vpop.permute.xlu0 %234
    %vm240 = vcmask 15360
    %v241 = vsel %vm240, %v217, %v229
    %v242 = vsel %vm240, %v219, %v231
    %v243 = vsel %vm240, %v221, %v233
    %v244 = vsel %vm240, %v223, %v235
    %245 = vrot.lane.b32.xlu0 %v59, 126
    %v246 = vpop.permute.xlu0 %245
    %247 = vrot.lane.b32.xlu0 %v60, 126
    %v248 = vpop.permute.xlu0 %247
    %249 = vrot.lane.b32.xlu0 %v61, 126
    %v250 = vpop.permute.xlu0 %249
    %251 = vrot.lane.b32.xlu0 %v62, 126
    %v252 = vpop.permute.xlu0 %251
    %257 = vrot.lane.b32.xlu0 %v59, 14
    %v258 = vpop.permute.xlu0 %257
    %259 = vrot.lane.b32.xlu0 %v60, 14
    %v260 = vpop.permute.xlu0 %259
    %261 = vrot.lane.b32.xlu0 %v61, 14
    %v262 = vpop.permute.xlu0 %261
    %263 = vrot.lane.b32.xlu0 %v62, 14
    %v264 = vpop.permute.xlu0 %263
    %vm269 = vcmask 113664
    %v270 = vsel %vm269, %v246, %v258
    %v271 = vsel %vm269, %v248, %v260
    %v272 = vsel %vm269, %v250, %v262
    %v273 = vsel %vm269, %v252, %v264
    %v274 = vadd.f32 %v241, %v270
    %v275 = vadd.f32 %v242, %v271
    %v276 = vadd.f32 %v243, %v272
    %v277 = vadd.f32 %v244, %v273
    %v278 = vadd.f32 %v212, %v274
    %v279 = vadd.f32 %v213, %v275
    %v280 = vadd.f32 %v214, %v276
    %v281 = vadd.f32 %v215, %v277
    %v282 = vmul.f32 %v59, %v278
    %v283 = vmul.f32 %v60, %v279
    %v284 = vmul.f32 %v61, %v280
    %v285 = vmul.f32 %v62, %v281
    %v286 = vmul.f32 %v282, 2.0
    %v287 = vmul.f32 %v283, 2.0
    %v288 = vmul.f32 %v284, 2.0
    %v289 = vmul.f32 %v285, 2.0
    %vm290 = vcmask 130048
    %v291 = vsel %vm290, %v282, 0.0
    %292 = vadd.xlane.f32.xlu0 %v291
    %v293 = vpop.xlane.xlu0 %292
    %v294 = vsel %vm290, %v283, 0.0
    %295 = vadd.xlane.f32.xlu0 %v294
    %v296 = vpop.xlane.xlu0 %295
    %v297 = vsel %vm290, %v284, 0.0
    %298 = vadd.xlane.f32.xlu0 %v297
    %v299 = vpop.xlane.xlu0 %298
    %v300 = vsel %vm290, %v285, 0.0
    %301 = vadd.xlane.f32.xlu0 %v300
    %v302 = vpop.xlane.xlu0 %301
    %v307 = vlaneseq
    %v308 = vand.u32 %v307, 127
    %v309 = vlaneseq
    %v310 = vshrl.u32 %v309, 7
    %v311 = vsub.s32 %v308, %v310
    %v312 = vrot.slane %v293, %v311
    %v313 = vadd.s32 %v308, 4294967288
    %v314 = vlaneseq
    %v315 = vshrl.u32 %v314, 7
    %v316 = vsub.s32 %v313, %v315
    %v317 = vrot.slane %v296, %v316
    %vm318 = vcmask 130112
    %v319 = vsel %vm318, %v317, %v312
    %v320 = vlaneseq
    %v321 = vshrl.u32 %v320, 7
    %v322 = vsub.s32 %v308, %v321
    %v323 = vrot.slane %v299, %v322
    %v324 = vlaneseq
    %v325 = vshrl.u32 %v324, 7
    %v326 = vsub.s32 %v313, %v325
    %v327 = vrot.slane %v302, %v326
    %v328 = vsel %vm318, %v327, %v323
    %vm329 = vcmask 1041409
    %v330 = vsel %vm329, %v328, %v319
    %vm332 = vcmask 123904
    %v333 = vsel %vm332, %v330, 0.0
    %334 = vadd.xlane.f32.xlu0 %v333
    %v335 = vpop.xlane.xlu0 %334
    %v336 = vmul.f32 %v335, -0.25
    %v337 = vsel %vm290, %v59, 0.0
    %338 = vadd.xlane.f32.xlu0 %v337
    %v339 = vpop.xlane.xlu0 %338
    %v340 = vsel %vm290, %v60, 0.0
    %341 = vadd.xlane.f32.xlu0 %v340
    %v342 = vpop.xlane.xlu0 %341
    %v343 = vsel %vm290, %v61, 0.0
    %344 = vadd.xlane.f32.xlu0 %v343
    %v345 = vpop.xlane.xlu0 %344
    %v346 = vsel %vm290, %v62, 0.0
    %347 = vadd.xlane.f32.xlu0 %v346
    %v348 = vpop.xlane.xlu0 %347
    %v353 = vlaneseq
    %v354 = vshrl.u32 %v353, 7
    %v355 = vsub.s32 %v308, %v354
    %v356 = vrot.slane %v339, %v355
    %v357 = vlaneseq
    %v358 = vshrl.u32 %v357, 7
    %v359 = vsub.s32 %v313, %v358
    %v360 = vrot.slane %v342, %v359
    %v361 = vsel %vm318, %v360, %v356
    %v362 = vlaneseq
    %v363 = vshrl.u32 %v362, 7
    %v364 = vsub.s32 %v308, %v363
    %v365 = vrot.slane %v345, %v364
    %v366 = vlaneseq
    %v367 = vshrl.u32 %v366, 7
    %v368 = vsub.s32 %v313, %v367
    %v369 = vrot.slane %v348, %v368
    %v370 = vsel %vm318, %v369, %v365
    %v371 = vsel %vm329, %v370, %v361
    %v373 = vsel %vm332, %v371, 0.0
    %374 = vadd.xlane.f32.xlu0 %v373
    %v375 = vpop.xlane.xlu0 %374
    %v376 = vmul.f32 %v375, 0.00390625
    %vm377 = vcmp.eq.s32.totalorder %v308, 0
    %vm378 = vcmp.eq.s32.totalorder %v308, 1
    %v379 = vmul.f32 %v336, %v336
    %vm380 = vcmp.eq.s32.totalorder %v308, 2
    %v381 = vand.u32 2147483647, %v376
    %v382 = vmul.f32 %v376, %v376
    %v383 = vsel %vm380, %v381, %v382
    %v384 = vsel %vm378, %v379, %v383
    %v385 = vsel %vm377, %v336, %v384
    %vm386 = vcmask 25600
    %387 = vst.msk [vmem:[#allocation9] sm:$0x3] %vm386, %v385
    %v388 = vsub.f32 0.0, %v286
    %v389 = vsub.f32 0.0, %v287
    %v390 = vsub.f32 0.0, %v288
    %v391 = vsub.f32 0.0, %v289
    %v392 = vmul.f32 %v388, %v64
    %v393 = vmul.f32 %v389, %v65
    %v394 = vmul.f32 %v390, %v66
    %v395 = vmul.f32 %v391, %v67
    %v396 = vmul.f32 %v392, 1.442695
    %v397 = vpow.pop %v396
    %v398 = vmul.f32 %v393, 1.442695
    %v399 = vpow.pop %v398
    %v400 = vmul.f32 %v394, 1.442695
    %v401 = vpow.pop %v400
    %v402 = vmul.f32 %v395, 1.442695
    %v403 = vpow.pop %v402
    %vm404 = vcmp.le.f32.partialorder %v286, 0.0
    %vm405 = vcmp.le.f32.partialorder %v287, 0.0
    %vm406 = vcmp.le.f32.partialorder %v288, 0.0
    %vm407 = vcmp.le.f32.partialorder %v289, 0.0
    %v408 = vsel %vm404, 1.0, %v397
    %v409 = vsel %vm405, 1.0, %v399
    %v410 = vsel %vm406, 1.0, %v401
    %v411 = vsel %vm407, 1.0, %v403
    %vm412 = vcmp.lt.f32.partialorder %v68, %v408
    %vm413 = vcmp.lt.f32.partialorder %v69, %v409
    %vm414 = vcmp.lt.f32.partialorder %v70, %v410
    %vm415 = vcmp.lt.f32.partialorder %v71, %v411
    %vm416 = vcmp.gt.f32.partialorder %v72, 0.9
    %vm417 = vcmp.gt.f32.partialorder %v73, 0.9
    %v418 = vsel %vm416, 1, 0
    %v419 = vsel %vm417, 1, 0
    %vm420 = vcmp.eq.s32.totalorder %v418, 1
    %vm421 = vcmp.eq.s32.totalorder %v419, 1
    %vm422 = vmand %vm412, %vm420
    %vm423 = vmand %vm413, %vm421
    %vm424 = vmand %vm414, %vm420
    %vm425 = vmand %vm415, %vm421
    %v426 = vsub.f32 0.0, %v59
    %v427 = vsub.f32 0.0, %v60
    %v428 = vsub.f32 0.0, %v61
    %v429 = vsub.f32 0.0, %v62
    %v430 = vsel %vm422, %v426, %v59
    %v431 = vsel %vm423, %v427, %v60
    %v432 = vsel %vm424, %v428, %v61
    %v433 = vsel %vm425, %v429, %v62
    %434 = vst.msk [vmem:[#allocation8] sm:$0xff] %vm290, %v430
    %435 = vst.msk [vmem:[#allocation8 + $0x8] sm:$0xff] %vm290, %v431
    %436 = vst.msk [vmem:[#allocation8 + $0x10] sm:$0xff] %vm290, %v432
    %437 = vst.msk [vmem:[#allocation8 + $0x18] sm:$0xff] %vm290, %v433
    // Predicated region
    $region26: #{_ising_forward.1} parent=1 // pred_check
      _
    $region27: #{_ising_forward.1} parent=1 // pred_check_branch
      %439 = sbr.rel (0) target = $region29
    $region28: #{_ising_forward.1} parent=1 // pred_region
      #allocation12 [shape = 'u32[6]{0}', space=smem, size = 0x18, scoped, tag = 'DMA stride descriptor']
      %s441 = ssub.s32 512, 512
      %442 = vsyncadd [#allocation4], %s441
      %s444 = sshll.u32 1, 14
      %s445 = sxor.u32 4294967295, %s444
      %s448 = sshll.u32 7, 18
      %s449 = sxor.u32 4294967295, %s448
      %s450 = sand.u32 0, %s449
      %s452 = sor.u32 %s450, 0
      %s454 = sshll.u32 3, 24
      %s455 = sxor.u32 4294967295, %s454
      %s456 = sand.u32 %s452, %s455
      %s458 = sor.u32 %s456, 0
      %s459 = sshll.u32 [#allocation8], 4
      %s460 = int_to_ptr.vmem [resolvable:$true] %s459
      %466 = sst [smem:[#allocation12]] 256
      %s467 = scalar_lea.smem [#allocation12], 1
      %468 = sst [smem:[%s467]] 512
      %s469 = scalar_lea.smem [#allocation12], 2
      %470 = sst [smem:[%s469]] 2
      %s471 = scalar_lea.smem [#allocation12], 3
      %472 = sst [smem:[%s471]] 128
      %s473 = scalar_lea.smem [#allocation12], 4
      %474 = sst [smem:[%s473]] 128
      %s475 = scalar_lea.smem [#allocation12], 5
      %476 = sst [smem:[%s475]] 8
      %478 = dma.general %s460, 512, %s3, [#allocation4], [#allocation11], [#allocation12], %s458, 0
    $region29: #{_ising_forward.1} parent=1 // pred_fallthru
      _
    // Predicated region
    $region30: #{_ising_forward.1} parent=1 // pred_check
      _
    $region31: #{_ising_forward.1} parent=1 // pred_check_branch
      %480 = sbr.rel (0) target = $region33
    $region32: #{_ising_forward.1} parent=1 // pred_region
      %s482 = ssub.s32 32, 32
      %483 = vsyncadd [#allocation10], %s482
      %s485 = sshll.u32 [#allocation9], 4
      %s486 = int_to_ptr.vmem [resolvable:$true] %s485
      %488 = dma.vmem_to_hbm [thread:$0]  %s486, 32, %s4, [#allocation10]
    $region33: #{_ising_forward.1} parent=1 // pred_fallthru
      _
    // Predicated region
    $region34: #{_ising_forward.1} parent=1 // pred_check
      _
    $region35: #{_ising_forward.1} parent=1 // pred_check_branch
      %490 = sbr.rel (0) target = $region37
    $region36: #{_ising_forward.1} parent=1 // pred_region
      %491 = dma.done [#allocation4], 512
    $region37: #{_ising_forward.1} parent=1 // pred_fallthru
      _
    // Predicated region
    $region38: #{_ising_forward.1} parent=1 // pred_check
      _
    $region39: #{_ising_forward.1} parent=1 // pred_check_branch
      %493 = sbr.rel (0) target = $region41
    $region40: #{_ising_forward.1} parent=1 // pred_region
      %494 = dma.done [#allocation10], 32
    $region41: #{_ising_forward.1} parent=1 // pred_fallthru
      _
    %495 = vsyncpa [#allocation3], 1
    %496 = vsyncpa [#allocation6], 1
    %497 = vsyncpa [#allocation4], 1
    %498 = vsyncpa [#allocation10], 1

</llo_original>
